<compile_context>
chip_gen: v7x
topology: tpu7x:2x2x1
jax: 0.10.0
libtpu: 0.0.40
codegen_flags: <defaults>
</compile_context>

<pallas_src>
import functools

import jax
import jax.numpy as jnp
from jax.experimental import pallas as pl
from jax.experimental.pallas import tpu as pltpu


def _round_up(x, m):
    return ((x + m - 1) // m) * m


def mlp_logsoftmax_kernel(x_ref, w1_ref, b1_ref, w2_ref, b2_ref, o_ref):
    # fc1 (bf16 MXU, f32 accumulate) + bias + relu in f32
    x = x_ref[...]                                                    # (TB, d) bf16
    h = jnp.dot(x, w1_ref[...], preferred_element_type=jnp.float32)   # (TB, Hp) f32
    h = jnp.maximum(h + b1_ref[...], 0.0)
    # fc2 (bf16 MXU, f32 accumulate) + bias
    logits = jnp.dot(h.astype(jnp.bfloat16), w2_ref[...],
                     preferred_element_type=jnp.float32) + b2_ref[...]  # (TB, Cp) f32
    # numerically stable log_softmax over the (padded, lane-dense) class dim;
    # padded classes carry a -1e30 bias so exp() of them is exactly 0.
    m = jnp.max(logits, axis=-1, keepdims=True)
    s = logits - m
    lse = jnp.log(jnp.sum(jnp.exp(s), axis=-1, keepdims=True))
    o_ref[...] = (s - lse).astype(o_ref.dtype)


@functools.partial(jax.jit, static_argnames=("input_size", "tile_b"))
def net_forward(x, w1, b1, w2, b2, *, input_size, tile_b=512):
    """x: (..., input_size, input_size); w1: (d, H); b1: (H,) or (1,H); w2: (H, C); b2: (C,) or (1,C)."""
    d = input_size * input_size
    x2d = x.reshape(-1, d).astype(jnp.float32)
    B = x2d.shape[0]
    H = w1.shape[1]
    C = w2.shape[1]

    H_pad = _round_up(H, 128)
    C_pad = _round_up(C, 128)

    b1 = jnp.reshape(b1, (1, H)).astype(jnp.float32)
    b2 = jnp.reshape(b2, (1, C)).astype(jnp.float32)

    # Pad hidden dim with zeros (exact) and class dim with -1e30 bias (exact for softmax).
    w1p = jnp.zeros((d, H_pad), jnp.float32).at[:, :H].set(w1.astype(jnp.float32))
    b1p = jnp.zeros((1, H_pad), jnp.float32).at[:, :H].set(b1)
    w2p = jnp.zeros((H_pad, C_pad), jnp.float32).at[:H, :C].set(w2.astype(jnp.float32))
    b2p = jnp.full((1, C_pad), -1e30, jnp.float32).at[:, :C].set(b2)

    # Batch tiling: pad B up to a multiple of the tile so every block is full.
    TB = min(tile_b, _round_up(B, 8))
    B_pad = _round_up(B, TB)
    xp = jnp.zeros((B_pad, d), jnp.float32).at[:B].set(x2d)

    # bf16 MXU fast path (accumulation stays f32 inside the kernel).
    xp_bf = xp.astype(jnp.bfloat16)
    w1_bf = w1p.astype(jnp.bfloat16)
    w2_bf = w2p.astype(jnp.bfloat16)

    n_tiles = B_pad // TB
    cost = pl.CostEstimate(
        flops=2 * B_pad * (d * H_pad + H_pad * C_pad),
        transcendentals=B_pad * (C_pad + 1),
        bytes_accessed=(xp_bf.size * 2 + w1_bf.size * 2 + w2_bf.size * 2
                        + b1p.size * 4 + b2p.size * 4 + B_pad * C_pad * 4),
    )

    out_p = pl.pallas_call(
        mlp_logsoftmax_kernel,
        out_shape=jax.ShapeDtypeStruct((B_pad, C_pad), jnp.float32),
        grid_spec=pltpu.PrefetchScalarGridSpec(
            num_scalar_prefetch=0,
            grid=(n_tiles,),
            in_specs=[
                pl.BlockSpec((TB, d), lambda i: (i, 0)),        # x tile streams per grid step
                pl.BlockSpec((d, H_pad), lambda i: (0, 0)),     # weights stay VMEM-resident
                pl.BlockSpec((1, H_pad), lambda i: (0, 0)),
                pl.BlockSpec((H_pad, C_pad), lambda i: (0, 0)),
                pl.BlockSpec((1, C_pad), lambda i: (0, 0)),
            ],
            out_specs=pl.BlockSpec((TB, C_pad), lambda i: (i, 0)),
        ),
        compiler_params=pltpu.CompilerParams(
            dimension_semantics=("parallel",),
            vmem_limit_bytes=32 * 1024 * 1024,
        ),
        cost_estimate=cost,
    )(xp_bf, w1_bf, b1p, w2_bf, b2p)

    # Drop batch padding and the padded (lane-filler) classes.
    return out_p[:B, :C]


def init_params(key, input_size, neuron, num):
    """Deterministic init mimicking torch.nn.Linear (uniform +-1/sqrt(fan_in))."""
    d = input_size * input_size
    k1, k2, k3, k4 = jax.random.split(key, 4)
    bound1 = 1.0 / jnp.sqrt(d)
    bound2 = 1.0 / jnp.sqrt(neuron)
    # stored as (in, out) so the kernel does x @ W
    w1 = jax.random.uniform(k1, (d, neuron), jnp.float32, -bound1, bound1)
    b1 = jax.random.uniform(k2, (1, neuron), jnp.float32, -bound1, bound1)
    w2 = jax.random.uniform(k3, (neuron, num), jnp.float32, -bound2, bound2)
    b2 = jax.random.uniform(k4, (1, num), jnp.float32, -bound2, bound2)
    return w1, b1, w2, b2


def _reference(x, w1, b1, w2, b2, input_size):
    d = input_size * input_size
    x2d = x.reshape(-1, d).astype(jnp.float32)
    h = jnp.maximum(x2d @ w1 + b1, 0.0)
    logits = h @ w2 + b2
    return jax.nn.log_softmax(logits, axis=-1)


if __name__ == "__main__":
    # Small shapes consistent with the module: inputSize=16, Neuron=32, num=10
    INPUT_SIZE = 16
    NEURON = 32
    NUM = 10
    BATCH = 8

    key = jax.random.PRNGKey(0)
    kx, kp = jax.random.split(key)
    x = jax.random.normal(kx, (BATCH, INPUT_SIZE, INPUT_SIZE), jnp.float32)
    w1, b1, w2, b2 = init_params(kp, INPUT_SIZE, NEURON, NUM)

    out = net_forward(x, w1, b1, w2, b2, input_size=INPUT_SIZE)
    out = jax.block_until_ready(out)

    assert out.shape == (BATCH, NUM)
    # Log-probabilities sum (in prob space) to ~1 per row.
    row_sums = jnp.exp(out).sum(axis=1)
    assert jnp.allclose(row_sums, 1.0, atol=1e-3), row_sums
    # Match the pure-JAX f32 reference (loose tolerance: bf16 matmul operands).
    ref = _reference(x, w1, b1, w2, b2, INPUT_SIZE)
    assert jnp.allclose(out, ref, atol=5e-2), float(jnp.max(jnp.abs(out - ref)))

    print("KERNEL_OK")
</pallas_src>

<mosaic_0001>
module attributes {stable_mosaic.version = 11 : i64} {
  func.func @mlp_logsoftmax_kernel(%arg0: i32, %arg1: memref<8x256xbf16, #tpu.memory_space<vmem>>, %arg2: memref<256x128xbf16, #tpu.memory_space<vmem>>, %arg3: memref<1x128xf32, #tpu.memory_space<vmem>>, %arg4: memref<128x128xbf16, #tpu.memory_space<vmem>>, %arg5: memref<1x128xf32, #tpu.memory_space<vmem>>, %arg6: memref<8x128xf32, #tpu.memory_space<vmem>>) attributes {dimension_semantics = [#tpu.dimension_semantics<parallel>], iteration_bounds = array<i64: 1>, scalar_prefetch = 0 : i64, scratch_operands = 0 : i64, tpu.core_type = #tpu.core_type<tc>, window_params = [{transform_indices = @transform_0, window_bounds = array<i64: 8, 256>}, {pipeline_mode = #tpu.pipeline_mode<synchronous>, transform_indices = @transform_1, window_bounds = array<i64: 256, 128>}, {pipeline_mode = #tpu.pipeline_mode<synchronous>, transform_indices = @transform_2, window_bounds = array<i64: 1, 128>}, {pipeline_mode = #tpu.pipeline_mode<synchronous>, transform_indices = @transform_3, window_bounds = array<i64: 128, 128>}, {pipeline_mode = #tpu.pipeline_mode<synchronous>, transform_indices = @transform_4, window_bounds = array<i64: 1, 128>}, {transform_indices = @transform_5, window_bounds = array<i64: 8, 128>}]} {
    %c0 = arith.constant 0 : index
    %c0_0 = arith.constant 0 : index
    %0 = vector.load %arg1[%c0, %c0_0] : memref<8x256xbf16, #tpu.memory_space<vmem>>, vector<8x256xbf16>
    %c0_1 = arith.constant 0 : index
    %c0_2 = arith.constant 0 : index
    %1 = vector.load %arg2[%c0_1, %c0_2] : memref<256x128xbf16, #tpu.memory_space<vmem>>, vector<256x128xbf16>
    %cst = arith.constant dense<0.000000e+00> : vector<8x128xf32>
    %2 = tpu.matmul %0, %1, %cst {dimension_numbers = #tpu.dot_dimension_numbers<[1], [0], [0], [1], [0, 0, 1, 1], [], []>} : vector<8x256xbf16>, vector<256x128xbf16>, vector<8x128xf32> -> vector<8x128xf32>
    %c0_3 = arith.constant 0 : index
    %c0_4 = arith.constant 0 : index
    %3 = vector.load %arg3[%c0_3, %c0_4] : memref<1x128xf32, #tpu.memory_space<vmem>>, vector<1x128xf32>
    %4 = vector.broadcast %3 : vector<1x128xf32> to vector<8x128xf32>
    %5 = arith.addf %2, %4 : vector<8x128xf32>
    %cst_5 = arith.constant 0.000000e+00 : f32
    %6 = vector.broadcast %cst_5 : f32 to vector<8x128xf32>
    %7 = arith.maximumf %5, %6 : vector<8x128xf32>
    %8 = arith.truncf %7 : vector<8x128xf32> to vector<8x128xbf16>
    %c0_6 = arith.constant 0 : index
    %c0_7 = arith.constant 0 : index
    %9 = vector.load %arg4[%c0_6, %c0_7] : memref<128x128xbf16, #tpu.memory_space<vmem>>, vector<128x128xbf16>
    %cst_8 = arith.constant dense<0.000000e+00> : vector<8x128xf32>
    %10 = tpu.matmul %8, %9, %cst_8 {dimension_numbers = #tpu.dot_dimension_numbers<[1], [0], [0], [1], [0, 0, 1, 1], [], []>} : vector<8x128xbf16>, vector<128x128xbf16>, vector<8x128xf32> -> vector<8x128xf32>
    %c0_9 = arith.constant 0 : index
    %c0_10 = arith.constant 0 : index
    %11 = vector.load %arg5[%c0_9, %c0_10] : memref<1x128xf32, #tpu.memory_space<vmem>>, vector<1x128xf32>
    %12 = vector.broadcast %11 : vector<1x128xf32> to vector<8x128xf32>
    %13 = arith.addf %10, %12 : vector<8x128xf32>
    %cst_11 = arith.constant dense<0xFF800000> : vector<8xf32>
    %14 = vector.multi_reduction <maximumf>, %13, %cst_11 [1] : vector<8x128xf32> to vector<8xf32>
    %15 = vector.shape_cast %14 : vector<8xf32> to vector<8x1xf32>
    %16 = vector.broadcast %15 : vector<8x1xf32> to vector<8x128xf32>
    %17 = arith.subf %13, %16 : vector<8x128xf32>
    %18 = math.exp %17 : vector<8x128xf32>
    %cst_12 = arith.constant dense<0.000000e+00> : vector<8xf32>
    %19 = vector.multi_reduction <add>, %18, %cst_12 [1] : vector<8x128xf32> to vector<8xf32>
    %20 = vector.shape_cast %19 : vector<8xf32> to vector<8x1xf32>
    %21 = math.log %20 : vector<8x1xf32>
    %22 = vector.broadcast %21 : vector<8x1xf32> to vector<8x128xf32>
    %23 = arith.subf %17, %22 : vector<8x128xf32>
    %c0_13 = arith.constant 0 : index
    %c0_14 = arith.constant 0 : index
    %24 = vector.load %arg6[%c0_13, %c0_14] : memref<8x128xf32, #tpu.memory_space<vmem>>, vector<8x128xf32>
    tpu.vector_store %arg6[%c0_13, %c0_14], %23 {strides = array<i32>} : memref<8x128xf32, #tpu.memory_space<vmem>>, vector<8x128xf32>,
    return
  }
  func.func @transform_0(%arg0: i32) -> (i32, i32) {
    %c0_i32 = arith.constant 0 : i32
    %c0_i32_0 = arith.constant 0 : i32
    return %arg0, %c0_i32 : i32, i32
  }
  func.func @transform_1(%arg0: i32) -> (i32, i32) {
    %c0_i32 = arith.constant 0 : i32
    %c0_i32_0 = arith.constant 0 : i32
    %c0_i32_1 = arith.constant 0 : i32
    return %c0_i32, %c0_i32_0 : i32, i32
  }
  func.func @transform_2(%arg0: i32) -> (i32, i32) {
    %c0_i32 = arith.constant 0 : i32
    %c0_i32_0 = arith.constant 0 : i32
    %c0_i32_1 = arith.constant 0 : i32
    return %c0_i32, %c0_i32_0 : i32, i32
  }
  func.func @transform_3(%arg0: i32) -> (i32, i32) {
    %c0_i32 = arith.constant 0 : i32
    %c0_i32_0 = arith.constant 0 : i32
    %c0_i32_1 = arith.constant 0 : i32
    return %c0_i32, %c0_i32_0 : i32, i32
  }
  func.func @transform_4(%arg0: i32) -> (i32, i32) {
    %c0_i32 = arith.constant 0 : i32
    %c0_i32_0 = arith.constant 0 : i32
    %c0_i32_1 = arith.constant 0 : i32
    return %c0_i32, %c0_i32_0 : i32, i32
  }
  func.func @transform_5(%arg0: i32) -> (i32, i32) {
    %c0_i32 = arith.constant 0 : i32
    %c0_i32_0 = arith.constant 0 : i32
    return %arg0, %c0_i32 : i32, i32
  }
}

</mosaic_0001>

<llo_original>
// kernel: net_forward.1
$region0: #{net_forward.1}
  #allocation0 [shape = 'u32[]', space=smem, size = 0x4, offset = 0x4, fixed_abs, tag = 'smem constant byte address 0x4 - core index']
  #allocation1 [shape = 'u32[144,128]{1,0:T(1,128)}', space=vmem, size = 0x12000, scoped, tag = 'internal scratch']
  %s0 = inlined_call_operand.vmem [shape: bf16[8,256], index: 0, kind: input, shape index: {}]
  %s1 = inlined_call_operand.vmem [shape: bf16[256,128], index: 1, kind: input, shape index: {}]
  %s2 = inlined_call_operand.vmem [shape: f32[1,128], index: 2, kind: input, shape index: {}]
  %s3 = inlined_call_operand.vmem [shape: bf16[128,128], index: 3, kind: input, shape index: {}]
  %s4 = inlined_call_operand.vmem [shape: f32[1,128], index: 4, kind: input, shape index: {}]
  %s5 = inlined_call_operand.hbm [shape: f32[8,128], index: 5, kind: output, shape index: {}]
  %s6 = sld [smem:[#allocation0]]
  $region30: #{net_forward.1} parent=0
    _
  %s8 = ssub.s32 1, %s6
  %s9 = scalar_select 0, %s8, %s6
  $region1: #{net_forward.1} parent=0
    #allocation2 [shape = 'u8[4096]{0}', space=vmem, size = 0x1000, scoped, tag = 'output window, operand 0, single buffered']
    #allocation3 [shape = 's32[1]{0}', space=sflag, size = 0x4, scoped, tag = 'scoped memory for net_forward.1']
    %10 = vsyncpa [#allocation3], 0
    // Predicated region
    $region2: #{net_forward.1} parent=1 // pred_check
      _
    $region3: #{net_forward.1} parent=1 // pred_check_branch
      %12 = sbr.rel (0) target = $region5
    $region4: #{net_forward.1} parent=1 // pred_region
      _
    $region5: #{net_forward.1} parent=1 // pred_fallthru
      _
    // Predicated region
    $region6: #{net_forward.1} parent=1 // pred_check
      _
    $region7: #{net_forward.1} parent=1 // pred_check_branch
      %14 = sbr.rel (0) target = $region9
    $region8: #{net_forward.1} parent=1 // pred_region
      _
    $region9: #{net_forward.1} parent=1 // pred_fallthru
      _
    // Predicated region
    $region10: #{net_forward.1} parent=1 // pred_check
      _
    $region11: #{net_forward.1} parent=1 // pred_check_branch
      %16 = sbr.rel (0) target = $region13
    $region12: #{net_forward.1} parent=1 // pred_region
      _
    $region13: #{net_forward.1} parent=1 // pred_fallthru
      _
    // Predicated region
    $region14: #{net_forward.1} parent=1 // pred_check
      _
    $region15: #{net_forward.1} parent=1 // pred_check_branch
      %18 = sbr.rel (0) target = $region17
    $region16: #{net_forward.1} parent=1 // pred_region
      _
    $region17: #{net_forward.1} parent=1 // pred_fallthru
      _
    // Predicated region
    $region18: #{net_forward.1} parent=1 // pred_check
      _
    $region19: #{net_forward.1} parent=1 // pred_check_branch
      %20 = sbr.rel (0) target = $region21
    $region20: #{net_forward.1} parent=1 // pred_region
      _
    $region21: #{net_forward.1} parent=1 // pred_fallthru
      _
    %v22 = vld [vmem:[%s0] sm:$0xff]
    %v23 = vld [vmem:[%s1] sm:$0xf]
    %v24 = vld [vmem:[%s1 + $0x4] sm:$0xf]
    %v25 = vld [vmem:[%s1 + $0x8] sm:$0xf]
    %v26 = vld [vmem:[%s1 + $0xc] sm:$0xf]
    %v27 = vld [vmem:[%s1 + $0x10] sm:$0xf]
    %v28 = vld [vmem:[%s1 + $0x14] sm:$0xf]
    %v29 = vld [vmem:[%s1 + $0x18] sm:$0xf]
    %v30 = vld [vmem:[%s1 + $0x1c] sm:$0xf]
    %v31 = vld [vmem:[%s1 + $0x20] sm:$0xf]
    %v32 = vld [vmem:[%s1 + $0x24] sm:$0xf]
    %v33 = vld [vmem:[%s1 + $0x28] sm:$0xf]
    %v34 = vld [vmem:[%s1 + $0x2c] sm:$0xf]
    %v35 = vld [vmem:[%s1 + $0x30] sm:$0xf]
    %v36 = vld [vmem:[%s1 + $0x34] sm:$0xf]
    %v37 = vld [vmem:[%s1 + $0x38] sm:$0xf]
    %v38 = vld [vmem:[%s1 + $0x3c] sm:$0xf]
    %v39 = vld [vmem:[%s1 + $0x40] sm:$0xf]
    %v40 = vld [vmem:[%s1 + $0x44] sm:$0xf]
    %v41 = vld [vmem:[%s1 + $0x48] sm:$0xf]
    %v42 = vld [vmem:[%s1 + $0x4c] sm:$0xf]
    %v43 = vld [vmem:[%s1 + $0x50] sm:$0xf]
    %v44 = vld [vmem:[%s1 + $0x54] sm:$0xf]
    %v45 = vld [vmem:[%s1 + $0x58] sm:$0xf]
    %v46 = vld [vmem:[%s1 + $0x5c] sm:$0xf]
    %v47 = vld [vmem:[%s1 + $0x60] sm:$0xf]
    %v48 = vld [vmem:[%s1 + $0x64] sm:$0xf]
    %v49 = vld [vmem:[%s1 + $0x68] sm:$0xf]
    %v50 = vld [vmem:[%s1 + $0x6c] sm:$0xf]
    %v51 = vld [vmem:[%s1 + $0x70] sm:$0xf]
    %v52 = vld [vmem:[%s1 + $0x74] sm:$0xf]
    %v53 = vld [vmem:[%s1 + $0x78] sm:$0xf]
    %v54 = vld [vmem:[%s1 + $0x7c] sm:$0xf]
    %v55 = vld [vmem:[%s2] sm:$0x1]
    %v57 = vlaneseq
    %v58 = vshrl.u32 %v57, 7
    %v59 = vsub.s32 0, %v58
    %v60 = vrot.slane %v55, %v59
    %v63 = vunpack.c.l.b16 %v22
    %v64 = vunpack.c.h.b16 %v22
    %v65 = vpack.c.b16 %v63, %v63
    %v66 = vpack.c.b16 %v64, %v64
    %v101 = vunpack.c.l.b16 %v23
    %v102 = vunpack.c.l.b16 %v24
    %v103 = vunpack.c.l.b16 %v25
    %v104 = vunpack.c.l.b16 %v26
    %v105 = vunpack.c.l.b16 %v27
    %v106 = vunpack.c.l.b16 %v28
    %v107 = vunpack.c.l.b16 %v29
    %v108 = vunpack.c.l.b16 %v30
    %v109 = vunpack.c.l.b16 %v31
    %v110 = vunpack.c.l.b16 %v32
    %v111 = vunpack.c.l.b16 %v33
    %v112 = vunpack.c.l.b16 %v34
    %v113 = vunpack.c.l.b16 %v35
    %v114 = vunpack.c.l.b16 %v36
    %v115 = vunpack.c.l.b16 %v37
    %v116 = vunpack.c.l.b16 %v38
    %v117 = vunpack.c.l.b16 %v39
    %v118 = vunpack.c.l.b16 %v40
    %v119 = vunpack.c.l.b16 %v41
    %v120 = vunpack.c.l.b16 %v42
    %v121 = vunpack.c.l.b16 %v43
    %v122 = vunpack.c.l.b16 %v44
    %v123 = vunpack.c.l.b16 %v45
    %v124 = vunpack.c.l.b16 %v46
    %v125 = vunpack.c.l.b16 %v47
    %v126 = vunpack.c.l.b16 %v48
    %v127 = vunpack.c.l.b16 %v49
    %v128 = vunpack.c.l.b16 %v50
    %v129 = vunpack.c.l.b16 %v51
    %v130 = vunpack.c.l.b16 %v52
    %v131 = vunpack.c.l.b16 %v53
    %v132 = vunpack.c.l.b16 %v54
    %v133 = vpack.c.b16 %v102, %v101
    %v134 = vpack.c.b16 %v104, %v103
    %v135 = vpack.c.b16 %v106, %v105
    %v136 = vpack.c.b16 %v108, %v107
    %v137 = vpack.c.b16 %v110, %v109
    %v138 = vpack.c.b16 %v112, %v111
    %v139 = vpack.c.b16 %v114, %v113
    %v140 = vpack.c.b16 %v116, %v115
    %v141 = vpack.c.b16 %v118, %v117
    %v142 = vpack.c.b16 %v120, %v119
    %v143 = vpack.c.b16 %v122, %v121
    %v144 = vpack.c.b16 %v124, %v123
    %v145 = vpack.c.b16 %v126, %v125
    %v146 = vpack.c.b16 %v128, %v127
    %v147 = vpack.c.b16 %v130, %v129
    %v148 = vpack.c.b16 %v132, %v131
    %165 = vmatprep.subr.bf16.mxu0 0
    %166 = vmatpush1.bf16.msra.mxu0 %v133
    %167 = vmatprep.subr.bf16.mxu0 0
    %168 = vmatpush1.bf16.msra.mxu0 %v134
    %169 = vmatprep.subr.bf16.mxu0 0
    %170 = vmatpush1.bf16.msra.mxu0 %v135
    %171 = vmatprep.subr.bf16.mxu0 0
    %172 = vmatpush1.bf16.msra.mxu0 %v136
    %173 = vmatprep.subr.bf16.mxu0 0
    %174 = vmatpush1.bf16.msra.mxu0 %v137
    %175 = vmatprep.subr.bf16.mxu0 0
    %176 = vmatpush1.bf16.msra.mxu0 %v138
    %177 = vmatprep.subr.bf16.mxu0 0
    %178 = vmatpush1.bf16.msra.mxu0 %v139
    %179 = vmatprep.subr.bf16.mxu0 0
    %180 = vmatpush1.bf16.msra.mxu0 %v140
    %181 = vmatprep.subr.bf16.mxu0 0
    %182 = vmatpush1.bf16.msra.mxu0 %v141
    %183 = vmatprep.subr.bf16.mxu0 0
    %184 = vmatpush1.bf16.msra.mxu0 %v142
    %185 = vmatprep.subr.bf16.mxu0 0
    %186 = vmatpush1.bf16.msra.mxu0 %v143
    %187 = vmatprep.subr.bf16.mxu0 0
    %188 = vmatpush1.bf16.msra.mxu0 %v144
    %189 = vmatprep.subr.bf16.mxu0 0
    %190 = vmatpush1.bf16.msra.mxu0 %v145
    %191 = vmatprep.subr.bf16.mxu0 0
    %192 = vmatpush1.bf16.msra.mxu0 %v146
    %193 = vmatprep.subr.bf16.mxu0 0
    %194 = vmatpush1.bf16.msra.mxu0 %v147
    %195 = vmatprep.subr.bf16.mxu0 0
    %196 = vmatpush1.bf16.msra.mxu0 %v148
    %197 = vmatprep.mubr.bf16.mxu0 %v66
    %198 = vmatmul.mubr.bf16.gmra.mrb[0].mxu0 %v65
    %v199 = vpop.f32.mrb[0].mxu0
    %v200 = vadd.f32 %v60, %v199
    %v201 = vpop.f32.mrb[0].mxu0
    %v202 = vpop.f32.mrb[0].mxu0
    %v203 = vpop.f32.mrb[0].mxu0
    %204 = vdwg.mxu0
    %v205 = vmax.f32 %v200, 0.0
    %v206 = vpack.c.bf16 %v205, %v205
    %v207 = vld [vmem:[%s3] sm:$0xf]
    %v208 = vld [vmem:[%s3 + $0x4] sm:$0xf]
    %v209 = vld [vmem:[%s3 + $0x8] sm:$0xf]
    %v210 = vld [vmem:[%s3 + $0xc] sm:$0xf]
    %v211 = vld [vmem:[%s3 + $0x10] sm:$0xf]
    %v212 = vld [vmem:[%s3 + $0x14] sm:$0xf]
    %v213 = vld [vmem:[%s3 + $0x18] sm:$0xf]
    %v214 = vld [vmem:[%s3 + $0x1c] sm:$0xf]
    %v215 = vld [vmem:[%s3 + $0x20] sm:$0xf]
    %v216 = vld [vmem:[%s3 + $0x24] sm:$0xf]
    %v217 = vld [vmem:[%s3 + $0x28] sm:$0xf]
    %v218 = vld [vmem:[%s3 + $0x2c] sm:$0xf]
    %v219 = vld [vmem:[%s3 + $0x30] sm:$0xf]
    %v220 = vld [vmem:[%s3 + $0x34] sm:$0xf]
    %v221 = vld [vmem:[%s3 + $0x38] sm:$0xf]
    %v222 = vld [vmem:[%s3 + $0x3c] sm:$0xf]
    %v223 = vld [vmem:[%s4] sm:$0x1]
    %v225 = vlaneseq
    %v226 = vshrl.u32 %v225, 7
    %v227 = vsub.s32 0, %v226
    %v228 = vrot.slane %v223, %v227
    %v246 = vunpack.c.l.b16 %v207
    %v247 = vunpack.c.l.b16 %v208
    %v248 = vunpack.c.l.b16 %v209
    %v249 = vunpack.c.l.b16 %v210
    %v250 = vunpack.c.l.b16 %v211
    %v251 = vunpack.c.l.b16 %v212
    %v252 = vunpack.c.l.b16 %v213
    %v253 = vunpack.c.l.b16 %v214
    %v254 = vunpack.c.l.b16 %v215
    %v255 = vunpack.c.l.b16 %v216
    %v256 = vunpack.c.l.b16 %v217
    %v257 = vunpack.c.l.b16 %v218
    %v258 = vunpack.c.l.b16 %v219
    %v259 = vunpack.c.l.b16 %v220
    %v260 = vunpack.c.l.b16 %v221
    %v261 = vunpack.c.l.b16 %v222
    %v262 = vpack.c.b16 %v247, %v246
    %v263 = vpack.c.b16 %v249, %v248
    %v264 = vpack.c.b16 %v251, %v250
    %v265 = vpack.c.b16 %v253, %v252
    %v266 = vpack.c.b16 %v255, %v254
    %v267 = vpack.c.b16 %v257, %v256
    %v268 = vpack.c.b16 %v259, %v258
    %v269 = vpack.c.b16 %v261, %v260
    %278 = vmatprep.subr.bf16.mxu0 0
    %279 = vmatpush1.bf16.msra.mxu0 %v262
    %280 = vmatprep.subr.bf16.mxu0 0
    %281 = vmatpush1.bf16.msra.mxu0 %v263
    %282 = vmatprep.subr.bf16.mxu0 0
    %283 = vmatpush1.bf16.msra.mxu0 %v264
    %284 = vmatprep.subr.bf16.mxu0 0
    %285 = vmatpush1.bf16.msra.mxu0 %v265
    %286 = vmatprep.subr.bf16.mxu0 0
    %287 = vmatpush1.bf16.msra.mxu0 %v266
    %288 = vmatprep.subr.bf16.mxu0 0
    %289 = vmatpush1.bf16.msra.mxu0 %v267
    %290 = vmatprep.subr.bf16.mxu0 0
    %291 = vmatpush1.bf16.msra.mxu0 %v268
    %292 = vmatprep.subr.bf16.mxu0 0
    %293 = vmatpush1.bf16.msra.mxu0 %v269
    %294 = vmatprep.subr.bf16.mxu0 0
    %295 = vmatpush1.bf16.msra.mxu0 0
    %296 = vmatprep.subr.bf16.mxu0 0
    %297 = vmatpush1.bf16.msra.mxu0 0
    %298 = vmatprep.subr.bf16.mxu0 0
    %299 = vmatpush1.bf16.msra.mxu0 0
    %300 = vmatprep.subr.bf16.mxu0 0
    %301 = vmatpush1.bf16.msra.mxu0 0
    %302 = vmatprep.subr.bf16.mxu0 0
    %303 = vmatpush1.bf16.msra.mxu0 0
    %304 = vmatprep.subr.bf16.mxu0 0
    %305 = vmatpush1.bf16.msra.mxu0 0
    %306 = vmatprep.subr.bf16.mxu0 0
    %307 = vmatpush1.bf16.msra.mxu0 0
    %308 = vmatprep.subr.bf16.mxu0 0
    %309 = vmatpush1.bf16.msra.mxu0 0
    %310 = vmatprep.mubr.bf16.mxu0 0
    %311 = vmatmul.mubr.bf16.gmra.mrb[0].mxu0 %v206
    %v312 = vpop.f32.mrb[0].mxu0
    %v313 = vadd.f32 %v228, %v312
    %v314 = vpop.f32.mrb[0].mxu0
    %v315 = vpop.f32.mrb[0].mxu0
    %v316 = vpop.f32.mrb[0].mxu0
    %317 = vdwg.mxu0
    %318 = vmax.xlane.f32.xlu0 %v313
    %v319 = vpop.xlane.xlu0 %318
    %v320 = vsub.f32 %v313, %v319
    %v321 = vmul.f32 %v320, 1.442695
    %v322 = vpow.pop %v321
    %323 = vadd.xlane.f32.xlu0 %v322
    %v324 = vpop.xlane.xlu0 %323
    %v325 = vlog2.pop %v324
    %v326 = vmul.f32 %v325, 0.6931472
    %v327 = vsub.f32 %v320, %v326
    %328 = vst [vmem:[#allocation2] sm:$0xff] %v327
    // Predicated region
    $region22: #{net_forward.1} parent=1 // pred_check
      _
    $region23: #{net_forward.1} parent=1 // pred_check_branch
      %330 = sbr.rel (0) target = $region25
    $region24: #{net_forward.1} parent=1 // pred_region
      %s332 = ssub.s32 128, 128
      %333 = vsyncadd [#allocation3], %s332
      %s335 = sshll.u32 [#allocation2], 4
      %s336 = int_to_ptr.vmem [resolvable:$true] %s335
      %338 = dma.vmem_to_hbm [thread:$0]  %s336, 128, %s5, [#allocation3]
    $region25: #{net_forward.1} parent=1 // pred_fallthru
      _
    // Predicated region
    $region26: #{net_forward.1} parent=1 // pred_check
      _
    $region27: #{net_forward.1} parent=1 // pred_check_branch
      %340 = sbr.rel (0) target = $region29
    $region28: #{net_forward.1} parent=1 // pred_region
      %341 = dma.done [#allocation3], 128
    $region29: #{net_forward.1} parent=1 // pred_fallthru
      _
    %342 = vsyncpa [#allocation3], 1

</llo_original>
